<compile_context>
chip_gen: v7x
topology: tpu7x:2x2x1
jax: 0.10.0
libtpu: 0.0.40
codegen_flags: <defaults>
</compile_context>

<pallas_src>
import functools

import jax
import jax.numpy as jnp
from jax.experimental import pallas as pl
from jax.experimental.pallas import tpu as pltpu

_LANES = 128
_MAX_BLOCK_ROWS = 8192            # 4 MiB f32 per input tile per step
_VMEM_LIMIT_BYTES = 32 * 1024 * 1024
_MIN_PALLAS_ELEMS = 65536         # below this, plain JAX is as fast (launch/DMA
                                  # setup dominates) and avoids a Mosaic compile


def _charbonnier_sum_kernel(pred_ref, label_ref, out_ref, *, eps, total_rows,
                            block_rows, steps_per_core, full_blocks,
                            total_blocks):
    """Accumulate per-lane partial sums of sqrt(diff^2 + eps) into out_ref.

    Grid is (num_cores, steps_per_core).  out_ref is this core's (1, 128) f32
    block; its block index is constant along the streaming axis, so it stays
    resident in VMEM and acts as 128 independent accumulators.
    """
    c = pl.program_id(0)          # core-split axis ("parallel")
    i = pl.program_id(1)          # streaming axis ("arbitrary")

    @pl.when(i == 0)
    def _():
        out_ref[...] = jnp.zeros_like(out_ref)

    block_idx = c * steps_per_core + i

    def _accumulate(mask_tail_rows):
        p = pred_ref[...]
        l = label_ref[...]
        if p.dtype != jnp.float32:
            p = p.astype(jnp.float32)
        if l.dtype != jnp.float32:
            l = l.astype(jnp.float32)
        diff = p - l
        val = jnp.sqrt(diff * diff + jnp.float32(eps))
        if mask_tail_rows:
            # Only emitted for blocks that are partially / fully out of range
            # (the partial last real block and any padding block from rounding
            # the grid up to 2 cores).  Keep the select-AFTER-compute pattern:
            # garbage rows may hold NaN/Inf and must be discarded by jnp.where.
            row = block_idx * block_rows + jax.lax.broadcasted_iota(
                jnp.int32, val.shape, 0)
            val = jnp.where(row < total_rows, val, jnp.float32(0.0))
        # Per-lane partial sums: one sublane reduce per step, no scalar
        # read-modify-write chain.
        out_ref[...] += jnp.sum(val, axis=0, keepdims=True)

    if full_blocks == total_blocks:
        # Every grid block is fully in range: no masking anywhere (static).
        _accumulate(False)
    else:
        @pl.when(block_idx < full_blocks)
        def _():
            _accumulate(False)

        @pl.when(block_idx >= full_blocks)
        def _():
            _accumulate(True)


def _charbonnier_bulk_sum(pred2d, label2d, eps):
    rows = pred2d.shape[0]
    block_rows = min(rows, _MAX_BLOCK_ROWS)
    num_blocks = pl.cdiv(rows, block_rows)       # real blocks in the array
    num_cores = 2 if num_blocks >= 2 else 1      # v7x 2-TC split; harmless on 1-TC chips
    steps_per_core = pl.cdiv(num_blocks, num_cores)
    total_blocks = num_cores * steps_per_core    # logical blocks in the grid
    full_blocks = rows // block_rows             # blocks needing no row mask

    kernel = functools.partial(
        _charbonnier_sum_kernel,
        eps=float(eps),
        total_rows=int(rows),
        block_rows=int(block_rows),
        steps_per_core=int(steps_per_core),
        full_blocks=int(full_blocks),
        total_blocks=int(total_blocks),
    )

    def in_index_map(c, i):
        # Clamp so a padding block (only possible when num_blocks is odd or the
        # last block is partial) never issues an out-of-bounds DMA; the kernel
        # masks its contribution to zero based on the *logical* block index.
        return (jnp.minimum(c * steps_per_core + i, num_blocks - 1), 0)

    n_bulk = rows * _LANES
    itemsize = jnp.dtype(pred2d.dtype).itemsize

    partial_lanes = pl.pallas_call(
        kernel,
        out_shape=jax.ShapeDtypeStruct((num_cores, _LANES), jnp.float32),
        grid_spec=pltpu.PrefetchScalarGridSpec(
            num_scalar_prefetch=0,
            grid=(num_cores, steps_per_core),
            in_specs=[
                pl.BlockSpec((block_rows, _LANES), in_index_map),
                pl.BlockSpec((block_rows, _LANES), in_index_map),
            ],
            out_specs=pl.BlockSpec((1, _LANES), lambda c, i: (c, 0)),
        ),
        compiler_params=pltpu.CompilerParams(
            dimension_semantics=("parallel", "arbitrary"),
            vmem_limit_bytes=_VMEM_LIMIT_BYTES,
        ),
        cost_estimate=pl.CostEstimate(
            flops=4 * n_bulk,
            transcendentals=n_bulk,
            bytes_accessed=2 * n_bulk * itemsize + num_cores * _LANES * 4,
        ),
    )(pred2d, label2d)
    return jnp.sum(partial_lanes)


def _charbonnier_loss_jax(pred, label, epsilon):
    d = pred.astype(jnp.float32) - label.astype(jnp.float32)
    return jnp.mean(jnp.sqrt(d * d + jnp.float32(epsilon)))


def charbonnier_loss(pred, label, epsilon=1e-6, *,
                     min_pallas_elements=_MIN_PALLAS_ELEMS):
    """mean(sqrt((pred - label)^2 + epsilon)) — matches the PyTorch module."""
    assert pred.shape == label.shape
    n = pred.size
    if n == 0:
        return jnp.float32(jnp.nan)

    if n < min_pallas_elements or (n % _LANES) != 0:
        # Fast path: tiny inputs (fixed launch/DMA-setup overhead dominates a
        # single-step kernel) and lane-misaligned sizes (Pallas would require a
        # materialized prefix copy of both tensors -> ~1.5x HBM traffic).
        return _charbonnier_loss_jax(pred, label, epsilon)

    rows = n // _LANES
    # Free reshape of a contiguous array (n is a multiple of 128): no extra
    # HBM traffic, both tensors are streamed exactly once by the kernel.
    pred2d = pred.reshape(rows, _LANES)
    label2d = label.reshape(rows, _LANES)
    total = _charbonnier_bulk_sum(pred2d, label2d, epsilon)
    return total / jnp.float32(n)


if __name__ == "__main__":
    key = jax.random.PRNGKey(0)
    eps = 1e-6

    def _ref(p, l):
        d = p.astype(jnp.float32) - l.astype(jnp.float32)
        return jnp.mean(jnp.sqrt(d * d + jnp.float32(eps)))

    cases = [
        # Canonical small shape, forced through the Pallas kernel (single block).
        ((2, 4, 16, 16), dict(min_pallas_elements=0)),
        # Same shape via the small-input plain-JAX fast path.
        ((2, 4, 16, 16), dict()),
        # rows=12288 -> 8192-row tiles, 2-core parallel split, masked tail block.
        ((2, 6, 512, 256), dict()),
        # Lane-misaligned element count -> plain-JAX fallback (no hidden copy).
        ((3, 5, 7, 11), dict()),
    ]

    for idx, (shape, kw) in enumerate(cases):
        k1, k2, key = jax.random.split(key, 3)
        pred = jax.random.normal(k1, shape, dtype=jnp.float32)
        label = jax.random.normal(k2, shape, dtype=jnp.float32)

        loss = jax.block_until_ready(charbonnier_loss(pred, label, eps, **kw))
        ref = jax.block_until_ready(_ref(pred, label))
        assert jnp.allclose(loss, ref, rtol=5e-5, atol=1e-6), (
            idx, shape, float(loss), float(ref))

    print("KERNEL_OK")
</pallas_src>

<mosaic_0001>
module attributes {stable_mosaic.version = 11 : i64} {
  func.func @_charbonnier_sum_kernel(%arg0: i32, %arg1: i32, %arg2: memref<16x128xf32, #tpu.memory_space<vmem>>, %arg3: memref<16x128xf32, #tpu.memory_space<vmem>>, %arg4: memref<1x128xf32, #tpu.memory_space<vmem>>) attributes {dimension_semantics = [#tpu.dimension_semantics<parallel>, #tpu.dimension_semantics<arbitrary>], iteration_bounds = array<i64: 1, 1>, scalar_prefetch = 0 : i64, scratch_operands = 0 : i64, tpu.core_type = #tpu.core_type<tc>, window_params = [{transform_indices = @transform_0, window_bounds = array<i64: 16, 128>}, {transform_indices = @transform_1, window_bounds = array<i64: 16, 128>}, {transform_indices = @transform_2, window_bounds = array<i64: 1, 128>}]} {
    %c0_i32 = arith.constant 0 : i32
    %0 = arith.cmpi eq, %arg1, %c0_i32 : i32
    %1 = arith.extui %0 : i1 to i32
    %c0_i32_0 = arith.constant 0 : i32
    %2 = arith.cmpi ne, %1, %c0_i32_0 : i32
    scf.if %2 {
      %cst_9 = arith.constant 0.000000e+00 : f32
      %15 = vector.broadcast %cst_9 : f32 to vector<1x128xf32>
      %c0_10 = arith.constant 0 : index
      %c0_11 = arith.constant 0 : index
      %16 = vector.load %arg4[%c0_10, %c0_11] : memref<1x128xf32, #tpu.memory_space<vmem>>, vector<1x128xf32>
      tpu.vector_store %arg4[%c0_10, %c0_11], %15 {strides = array<i32>} : memref<1x128xf32, #tpu.memory_space<vmem>>, vector<1x128xf32>,
    } else {
    }
    %c0 = arith.constant 0 : index
    %c0_1 = arith.constant 0 : index
    %3 = vector.load %arg2[%c0, %c0_1] : memref<16x128xf32, #tpu.memory_space<vmem>>, vector<16x128xf32>
    %c0_2 = arith.constant 0 : index
    %c0_3 = arith.constant 0 : index
    %4 = vector.load %arg3[%c0_2, %c0_3] : memref<16x128xf32, #tpu.memory_space<vmem>>, vector<16x128xf32>
    %5 = arith.subf %3, %4 : vector<16x128xf32>
    %6 = arith.mulf %5, %5 : vector<16x128xf32>
    %cst = arith.constant 9.99999997E-7 : f32
    %7 = vector.broadcast %cst : f32 to vector<16x128xf32>
    %8 = arith.addf %6, %7 : vector<16x128xf32>
    %9 = math.sqrt %8 : vector<16x128xf32>
    %c0_4 = arith.constant 0 : index
    %c0_5 = arith.constant 0 : index
    %10 = vector.load %arg4[%c0_4, %c0_5] : memref<1x128xf32, #tpu.memory_space<vmem>>, vector<1x128xf32>
    %cst_6 = arith.constant dense<0.000000e+00> : vector<128xf32>
    %11 = vector.multi_reduction <add>, %9, %cst_6 [0] : vector<16x128xf32> to vector<128xf32>
    %12 = vector.shape_cast %11 : vector<128xf32> to vector<1x128xf32>
    %13 = arith.addf %10, %12 : vector<1x128xf32>
    %c0_7 = arith.constant 0 : index
    %c0_8 = arith.constant 0 : index
    %14 = vector.load %arg4[%c0_7, %c0_8] : memref<1x128xf32, #tpu.memory_space<vmem>>, vector<1x128xf32>
    tpu.vector_store %arg4[%c0_7, %c0_8], %13 {strides = array<i32>} : memref<1x128xf32, #tpu.memory_space<vmem>>, vector<1x128xf32>,
    return
  }
  func.func @transform_0(%arg0: i32, %arg1: i32) -> (i32, i32) {
    %c1_i32 = arith.constant 1 : i32
    %0 = arith.muli %arg0, %c1_i32 : i32
    %1 = arith.addi %0, %arg1 : i32
    %c0_i32 = arith.constant 0 : i32
    %2 = arith.minsi %1, %c0_i32 : i32
    %c0_i32_0 = arith.constant 0 : i32
    %c0_i32_1 = arith.constant 0 : i32
    return %2, %c0_i32_0 : i32, i32
  }
  func.func @transform_1(%arg0: i32, %arg1: i32) -> (i32, i32) {
    %c1_i32 = arith.constant 1 : i32
    %0 = arith.muli %arg0, %c1_i32 : i32
    %1 = arith.addi %0, %arg1 : i32
    %c0_i32 = arith.constant 0 : i32
    %2 = arith.minsi %1, %c0_i32 : i32
    %c0_i32_0 = arith.constant 0 : i32
    %c0_i32_1 = arith.constant 0 : i32
    return %2, %c0_i32_0 : i32, i32
  }
  func.func @transform_2(%arg0: i32, %arg1: i32) -> (i32, i32) {
    %c0_i32 = arith.constant 0 : i32
    %c0_i32_0 = arith.constant 0 : i32
    return %arg0, %c0_i32 : i32, i32
  }
}

</mosaic_0001>

<llo_original>
// kernel: tpu_custom_call.1
$region0: #{tpu_custom_call.1}
  #allocation0 [shape = 'u32[]', space=smem, size = 0x4, offset = 0x4, fixed_abs, tag = 'smem constant byte address 0x4 - core index']
  #allocation1 [shape = 'u32[144,128]{1,0:T(1,128)}', space=vmem, size = 0x12000, scoped, tag = 'internal scratch']
  %s0 = inlined_call_operand.hbm [shape: f32[16,128], index: 0, kind: input, shape index: {}]
  %s1 = inlined_call_operand.hbm [shape: f32[16,128], index: 1, kind: input, shape index: {}]
  %s2 = inlined_call_operand.hbm [shape: f32[1,128], index: 2, kind: output, shape index: {}]
  %s3 = sld [smem:[#allocation0]]
  $region30: #{tpu_custom_call.1} parent=0
    _
  %s5 = ssub.s32 1, %s3
  %s6 = scalar_select 0, %s5, %s3
  $region1: #{tpu_custom_call.1} parent=0
    #allocation2 [shape = 'u8[8192]{0}', space=vmem, size = 0x2000, scoped, tag = 'input window, operand 0, single buffered']
    #allocation3 [shape = 's32[1]{0}', space=sflag, size = 0x4, scoped, tag = 'scoped memory for tpu_custom_call.1']
    #allocation4 [shape = 's32[1]{0}', space=sflag, size = 0x4, scoped, tag = 'scoped memory for tpu_custom_call.1']
    #allocation5 [shape = 'u8[8192]{0}', space=vmem, size = 0x2000, scoped, tag = 'input window, operand 1, single buffered']
    #allocation6 [shape = 's32[1]{0}', space=sflag, size = 0x4, scoped, tag = 'scoped memory for tpu_custom_call.1']
    #allocation7 [shape = 'u8[512]{0}', space=vmem, size = 0x400, scoped, tag = 'output window, operand 0, single buffered']
    %7 = vsyncpa [#allocation3], 0
    %8 = vsyncpa [#allocation6], 0
    %9 = vsyncpa [#allocation4], 0
    // Predicated region
    $region2: #{tpu_custom_call.1} parent=1 // pred_check
      _
    $region3: #{tpu_custom_call.1} parent=1 // pred_check_branch
      %11 = sbr.rel (0) target = $region5
    $region4: #{tpu_custom_call.1} parent=1 // pred_region
      %s12 = sadd.s32 0, 0
      %p13 = scmp.lt.s32.totalorder %s12, 0
      %s14 = scalar_select %p13, %s12, 0
      %s15 = smul.u32 2, %s14
      %s17 = ssub.s32 256, 256
      %18 = vsyncadd [#allocation3], %s17
      %s19 = smul.addr %s15, 128
      %s20 = scalar_lea.hbm %s0, %s19
      %s21 = sshll.u32 [#allocation2], 4
      %s22 = int_to_ptr.vmem [resolvable:$true] %s21
      %27 = dma.hbm_to_vmem [thread:$0]  %s20, 256, %s22, [#allocation3], 128, 128, 8
    $region5: #{tpu_custom_call.1} parent=1 // pred_fallthru
      _
    // Predicated region
    $region6: #{tpu_custom_call.1} parent=1 // pred_check
      _
    $region7: #{tpu_custom_call.1} parent=1 // pred_check_branch
      %29 = sbr.rel (0) target = $region9
    $region8: #{tpu_custom_call.1} parent=1 // pred_region
      %s30 = sadd.s32 0, 0
      %p31 = scmp.lt.s32.totalorder %s30, 0
      %s32 = scalar_select %p31, %s30, 0
      %s33 = smul.u32 2, %s32
      %s35 = ssub.s32 256, 256
      %36 = vsyncadd [#allocation6], %s35
      %s37 = smul.addr %s33, 128
      %s38 = scalar_lea.hbm %s1, %s37
      %s39 = sshll.u32 [#allocation5], 4
      %s40 = int_to_ptr.vmem [resolvable:$true] %s39
      %45 = dma.hbm_to_vmem [thread:$0]  %s38, 256, %s40, [#allocation6], 128, 128, 8
    $region9: #{tpu_custom_call.1} parent=1 // pred_fallthru
      _
    // Predicated region
    $region10: #{tpu_custom_call.1} parent=1 // pred_check
      _
    $region11: #{tpu_custom_call.1} parent=1 // pred_check_branch
      %47 = sbr.rel (0) target = $region13
    $region12: #{tpu_custom_call.1} parent=1 // pred_region
      %48 = dma.done [#allocation3], 256
    $region13: #{tpu_custom_call.1} parent=1 // pred_fallthru
      _
    // Predicated region
    $region14: #{tpu_custom_call.1} parent=1 // pred_check
      _
    $region15: #{tpu_custom_call.1} parent=1 // pred_check_branch
      %50 = sbr.rel (0) target = $region17
    $region16: #{tpu_custom_call.1} parent=1 // pred_region
      %51 = dma.done [#allocation6], 256
    $region17: #{tpu_custom_call.1} parent=1 // pred_fallthru
      _
    %s52 = sadd.s32 0, 0
    %p53 = scmp.lt.s32.totalorder %s52, 0
    %s54 = scalar_select %p53, %s52, 0
    %s55 = smul.u32 2, %s54
    %s56 = sadd.s32 0, 0
    %p57 = scmp.lt.s32.totalorder %s56, 0
    %s58 = scalar_select %p57, %s56, 0
    %s59 = smul.u32 2, %s58
    %p60 = scmp.eq.s32.totalorder 0, 0
    // Predicated region
    $region18: #{tpu_custom_call.1} parent=1 // pred_check
      %p61 = pneg %p60
    $region19: #{tpu_custom_call.1} parent=1 // pred_check_branch
      %63 = sbr.rel (%p61) target = $region21
    $region20: #{tpu_custom_call.1} parent=1 // pred_region
      %64 = vst [vmem:[#allocation7] sm:$0x1] 0.0
    $region21: #{tpu_custom_call.1} parent=1 // pred_fallthru
      _
    %v65 = vld [vmem:[#allocation2] sm:$0xff]
    %v66 = vld [vmem:[#allocation2 + $0x8] sm:$0xff]
    %v67 = vld [vmem:[#allocation5] sm:$0xff]
    %v68 = vld [vmem:[#allocation5 + $0x8] sm:$0xff]
    %v69 = vsub.f32 %v65, %v67
    %v70 = vsub.f32 %v66, %v68
    %v71 = vmul.f32 %v69, %v69
    %v72 = vmul.f32 %v70, %v70
    %v73 = vadd.f32 %v71, 1e-06
    %v74 = vadd.f32 %v72, 1e-06
    %v75 = vrsqrt.pop %v73
    %v76 = vmul.f32 %v73, %v75
    %vm77 = vcmp.eq.f32.partialorder %v73, inf
    %v78 = vsel %vm77, %v73, %v76
    %vm79 = vcmp.eq.f32.partialorder %v73, 0.0
    %v80 = vand.u32 %v73, 2147483648
    %v81 = vsel %vm79, %v80, %v78
    %v82 = vrsqrt.pop %v74
    %v83 = vmul.f32 %v74, %v82
    %vm84 = vcmp.eq.f32.partialorder %v74, inf
    %v85 = vsel %vm84, %v74, %v83
    %vm86 = vcmp.eq.f32.partialorder %v74, 0.0
    %v87 = vand.u32 %v74, 2147483648
    %v88 = vsel %vm86, %v87, %v85
    %v89 = vld [vmem:[#allocation7] sm:$0x1]
    %v90 = vadd.f32 %v81, %v88
    %v91 = vrot.slane %v90, 4
    %v92 = vadd.f32 %v90, %v91
    %v93 = vrot.slane %v92, 2
    %v94 = vadd.f32 %v92, %v93
    %v95 = vrot.slane %v94, 1
    %v96 = vadd.f32 %v94, %v95
    %v97 = vadd.f32 %v89, %v96
    %98 = vst [vmem:[#allocation7] sm:$0x1] %v97
    // Predicated region
    $region22: #{tpu_custom_call.1} parent=1 // pred_check
      _
    $region23: #{tpu_custom_call.1} parent=1 // pred_check_branch
      %100 = sbr.rel (0) target = $region25
    $region24: #{tpu_custom_call.1} parent=1 // pred_region
      %s102 = ssub.s32 16, 16
      %103 = vsyncadd [#allocation4], %s102
      %s105 = sshll.u32 [#allocation7], 4
      %s106 = int_to_ptr.vmem [resolvable:$true] %s105
      %108 = dma.vmem_to_hbm [thread:$0]  %s106, 16, %s2, [#allocation4]
    $region25: #{tpu_custom_call.1} parent=1 // pred_fallthru
      _
    // Predicated region
    $region26: #{tpu_custom_call.1} parent=1 // pred_check
      _
    $region27: #{tpu_custom_call.1} parent=1 // pred_check_branch
      %110 = sbr.rel (0) target = $region29
    $region28: #{tpu_custom_call.1} parent=1 // pred_region
      %111 = dma.done [#allocation4], 16
    $region29: #{tpu_custom_call.1} parent=1 // pred_fallthru
      _
    %112 = vsyncpa [#allocation3], 1
    %113 = vsyncpa [#allocation6], 1
    %114 = vsyncpa [#allocation4], 1

</llo_original>
